<compile_context>
chip_gen: v5e
topology: v5e:2x2
jax: 0.10.0
libtpu: 0.0.40
codegen_flags: <defaults>
</compile_context>

<pallas_src>
import functools
import math

import jax
import jax.numpy as jnp
from jax import lax
from jax.experimental import pallas as pl
from jax.experimental.pallas import tpu as pltpu


def _epa_dim_kernel(xh_ref, s_ref, o_ref, *, nh, hd, tq, tk):
    # xh_ref: (1, nh, N, hd)  head-major tokens (q = k = v), resident per batch
    # s_ref:  (1, nh, p, p)   precomputed spatial kernel S_h = kd_h^T @ vd_h (p == hd)
    # o_ref:  (1, tq, C)      lane-dense output tile for this query block
    qi = pl.program_id(1)
    q0 = pl.multiple_of(qi * tq, tq)
    n = xh_ref.shape[2]
    nk = n // tk
    cdt = xh_ref.dtype  # compute dtype (bf16 by default for f32 inputs)

    for h in range(nh):  # nh is small here; see TODO for fori_loop at large nh
        xq = xh_ref[0, h, pl.ds(q0, tq), :]                       # (tq, hd)

        # ---- channel attention, key-tiled:  sum_t sigmoid(q k_t^T) k_t ----
        def kv_step(t, acc):
            k0 = pl.multiple_of(t * tk, tk)
            xk = xh_ref[0, h, pl.ds(k0, tk), :]                   # (tk, hd)
            s = lax.dot_general(xq, xk,
                                dimension_numbers=(((1,), (1,)), ((), ())),
                                preferred_element_type=jnp.float32)  # (tq, tk)
            a = 0.5 * (jnp.tanh(0.5 * s) + 1.0)   # == sigmoid, single EUP op
            return acc + jnp.dot(a.astype(cdt), xk,
                                 preferred_element_type=jnp.float32)  # (tq, hd)

        c_out = lax.fori_loop(0, nk, kv_step,
                              jnp.zeros((tq, hd), jnp.float32),
                              unroll=(nk <= 4))

        # ---- spatial branch (reassociated): q @ (kd^T vd) = q @ S_h ----
        s_out = jnp.dot(xq, s_ref[0, h],
                        preferred_element_type=jnp.float32)          # (tq, hd)

        # residual + direct per-head store (bounds live ranges; HBM writeback of
        # the whole (1, tq, C) block stays lane-dense)
        o_ref[0, :, h * hd:(h + 1) * hd] = (
            c_out + s_out + xq.astype(jnp.float32)).astype(o_ref.dtype)


def _vmem_limit_bytes():
    """Generation-aware scoped-VMEM limit: physical minus headroom, capped."""
    cap = 128 * 1024 * 1024
    try:
        info = pltpu.get_tpu_info()
        cap = int(getattr(info, "vmem_capacity_bytes", cap))
    except Exception:
        pass
    # ~16 MiB headroom for Mosaic internal scratch; v7x(64M)->48M, v5e/v6e->100M.
    return int(min(max(cap - 16 * 1024 * 1024, 32 * 1024 * 1024),
                   100 * 1024 * 1024))


def epa_dim_forward(X, wk, bk, wv, bv, *, num_heads, down_scale_ratio,
                    tq=None, tk=None, compute_dtype=None):
    """X: (B, N, C); wk/wv: (p, hd, r, r) conv weights; bk/bv: (p,) biases."""
    B, N, C = X.shape
    nh = num_heads
    assert C % nh == 0
    hd = C // nh
    r = down_scale_ratio
    ws = int(math.isqrt(N))
    assert ws * ws == N and ws % r == 0
    p = wk.shape[0]
    assert p == hd, "module requires proj_features == in_features"

    if compute_dtype is None:
        compute_dtype = jnp.bfloat16 if X.dtype == jnp.float32 else X.dtype

    # Query-tile / key-tile sizes (sublane multiples dividing N).
    if tq is None:
        tq = N
        for cand in (256, 128, 64, 32, 16, 8):
            if cand <= N and N % cand == 0:
                tq = cand
                break
    assert N % tq == 0 and (tq % 8 == 0 or tq == N)
    if tk is None:
        tk = N
        for cand in (1024, 512, 256, 128):
            if cand <= N and N % cand == 0:
                tk = cand
                break
    assert N % tk == 0 and (tk % 8 == 0 or tk == N)

    # ---- Pure-JAX glue (cheap, O(B*N*C) + tiny conv) ----
    # Head-major tokens: q = k = v = rearrange(X, 'B N (nh hd) -> B nh N hd').
    x4 = X.reshape(B, N, nh, hd).transpose(0, 2, 1, 3)            # (B, nh, N, hd), f32
    xh = x4.astype(compute_dtype)                                 # kernel input

    # Spatial kernel S_h = kd_h^T @ vd_h, computed once per (batch, head) by a
    # tiny XLA conv + einsum (output is only (B, nh, p, p)).
    xsp = x4.reshape(B * nh, ws, ws, hd).transpose(0, 3, 1, 2)    # NCHW
    kd = lax.conv_general_dilated(xsp, wk, (r, r), "VALID",
                                  dimension_numbers=("NCHW", "OIHW", "NCHW"))
    kd = kd + bk.reshape(1, -1, 1, 1)
    vd = lax.conv_general_dilated(xsp, wv, (r, r), "VALID",
                                  dimension_numbers=("NCHW", "OIHW", "NCHW"))
    vd = vd + bv.reshape(1, -1, 1, 1)
    M = (ws // r) * (ws // r)
    kd = kd.reshape(B, nh, p, M)
    vd = vd.reshape(B, nh, p, M)
    S = jnp.einsum("bhdm,bhem->bhde", kd, vd).astype(compute_dtype)  # (B, nh, p, p)

    kernel = functools.partial(_epa_dim_kernel, nh=nh, hd=hd, tq=tq, tk=tk)

    out = pl.pallas_call(
        kernel,
        out_shape=jax.ShapeDtypeStruct((B, N, C), X.dtype),
        grid_spec=pltpu.PrefetchScalarGridSpec(
            num_scalar_prefetch=0,
            grid=(B, N // tq),
            in_specs=[
                # head-major tokens: resident per batch, single-buffered (block
                # index only changes with b -> no benefit from double-buffering)
                pl.BlockSpec((1, nh, N, hd), lambda b, q: (b, 0, 0, 0),
                             pipeline_mode=pl.Buffered(1)),
                # tiny spatial kernels: resident per batch
                pl.BlockSpec((1, nh, p, p), lambda b, q: (b, 0, 0, 0)),
            ],
            out_specs=pl.BlockSpec((1, tq, C), lambda b, q: (b, q, 0)),
        ),
        compiler_params=pltpu.CompilerParams(
            # no cross-step state anymore -> both axes parallel (v7x megacore)
            dimension_semantics=("parallel", "parallel"),
            vmem_limit_bytes=_vmem_limit_bytes(),
        ),
    )(xh, S)
    return out


def _reference_forward(X, wk, bk, wv, bv, *, num_heads, down_scale_ratio):
    """Pure-JAX replica of the PyTorch forward semantics (for verification)."""
    B, N, C = X.shape
    nh = num_heads
    hd = C // nh
    r = down_scale_ratio
    ws = int(math.isqrt(N))
    x4 = X.reshape(B, N, nh, hd).transpose(0, 2, 1, 3)  # q = k = v1 = v2
    attn_c = jax.nn.sigmoid(jnp.einsum("bhid,bhjd->bhij", x4, x4))
    c_out = jnp.einsum("bhij,bhjd->bhid", attn_c, x4)
    k_sp = x4.reshape(B * nh, ws, ws, hd).transpose(0, 3, 1, 2)  # NCHW
    kd = lax.conv_general_dilated(k_sp, wk, (r, r), "VALID",
                                  dimension_numbers=("NCHW", "OIHW", "NCHW"))
    kd = kd + bk.reshape(1, -1, 1, 1)
    vd = lax.conv_general_dilated(k_sp, wv, (r, r), "VALID",
                                  dimension_numbers=("NCHW", "OIHW", "NCHW"))
    vd = vd + bv.reshape(1, -1, 1, 1)
    p = wk.shape[0]
    kd = kd.reshape(B, nh, p, -1).transpose(0, 1, 3, 2)
    vd = vd.reshape(B, nh, p, -1).transpose(0, 1, 3, 2)
    attn_s = jnp.einsum("bhid,bhjd->bhij", x4, kd)
    s_out = jnp.einsum("bhij,bhjd->bhid", attn_s, vd)
    s_out = s_out.transpose(0, 2, 1, 3).reshape(B, N, -1)
    c_out = c_out.transpose(0, 2, 1, 3).reshape(B, N, C)
    return s_out + c_out + X


if __name__ == "__main__":
    # Small shapes consistent with the module: N a perfect square, ws divisible
    # by down_scale_ratio, proj_features == in_features.
    B = 2
    in_features = 16
    proj_features = 16
    num_heads = 2
    down_scale_ratio = 2
    N = 64  # ws = 8
    hd = in_features // num_heads
    p = proj_features // num_heads
    r = down_scale_ratio

    key = jax.random.PRNGKey(0)
    kx, kwk, kbk, kwv, kbv, klw, klb = jax.random.split(key, 7)

    X = jax.random.normal(kx, (B, N, in_features), dtype=jnp.float32)

    # Conv2d(down_sample_k / down_sample_v) parameters, deterministic init.
    wk = 0.1 * jax.random.normal(kwk, (p, hd, r, r), dtype=jnp.float32)
    bk = 0.1 * jax.random.normal(kbk, (p,), dtype=jnp.float32)
    wv = 0.1 * jax.random.normal(kwv, (p, hd, r, r), dtype=jnp.float32)
    bv = 0.1 * jax.random.normal(kbv, (p,), dtype=jnp.float32)

    # nn.Linear(in_features, proj_features*4) params — dead code in the reference
    # forward (its output is discarded by the rearrange-of-X bug); kept for shape
    # fidelity only.
    lin_w = 0.1 * jax.random.normal(klw, (proj_features * 4, in_features), jnp.float32)
    lin_b = 0.1 * jax.random.normal(klb, (proj_features * 4,), jnp.float32)
    _ = jnp.einsum("bnc,oc->bno", X, lin_w) + lin_b  # computed & discarded, as in reference

    ref = _reference_forward(X, wk, bk, wv, bv,
                             num_heads=num_heads, down_scale_ratio=down_scale_ratio)

    # 1) Exact-semantics check: f32 compute path, small tiles so the query-tile
    #    grid and the key-tile accumulation loop are both exercised.
    out_f32 = epa_dim_forward(X, wk, bk, wv, bv,
                              num_heads=num_heads, down_scale_ratio=down_scale_ratio,
                              tq=32, tk=32, compute_dtype=jnp.float32)
    out_f32 = jax.block_until_ready(out_f32)
    assert out_f32.shape == (B, N, in_features)
    err_f32 = float(jnp.max(jnp.abs(out_f32 - ref)))
    assert err_f32 < 2e-4, f"f32 path max err {err_f32}"

    # 2) Optimized default path (bf16 MXU operands, f32 accumulation): expected
    #    error is bf16 rounding scale for these magnitudes (|out| up to ~15).
    out_bf16 = epa_dim_forward(X, wk, bk, wv, bv,
                               num_heads=num_heads, down_scale_ratio=down_scale_ratio,
                               tq=32, tk=32)
    out_bf16 = jax.block_until_ready(out_bf16)
    err_bf16 = float(jnp.max(jnp.abs(out_bf16 - ref)))
    assert err_bf16 < 5e-1, f"bf16 path max err {err_bf16}"

    print("KERNEL_OK")
</pallas_src>

<mosaic_0001>
module attributes {stable_mosaic.version = 11 : i64} {
  func.func @_epa_dim_kernel(%arg0: i32, %arg1: i32, %arg2: memref<1x2x64x8xf32, #tpu.memory_space<vmem>>, %arg3: memref<1x2x8x8xf32, #tpu.memory_space<vmem>>, %arg4: memref<1x32x16xf32, #tpu.memory_space<vmem>>) attributes {dimension_semantics = [#tpu.dimension_semantics<parallel>, #tpu.dimension_semantics<parallel>], iteration_bounds = array<i64: 2, 2>, scalar_prefetch = 0 : i64, scratch_operands = 0 : i64, tpu.core_type = #tpu.core_type<tc>, window_params = [{pipeline_mode = #tpu.pipeline_mode<synchronous>, transform_indices = @transform_0, window_bounds = array<i64: 1, 2, 64, 8>}, {transform_indices = @transform_1, window_bounds = array<i64: 1, 2, 8, 8>}, {transform_indices = @transform_2, window_bounds = array<i64: 1, 32, 16>}]} {
    %c32_i32 = arith.constant 32 : i32
    %0 = arith.muli %arg1, %c32_i32 : i32
    %1 = tpu.assume_multiple %0, 32 : i32
    %c0 = arith.constant 0 : index
    %c0_0 = arith.constant 0 : index
    %2 = arith.index_cast %1 : i32 to index
    %c0_1 = arith.constant 0 : index
    %3 = vector.load %arg2[%c0, %c0_0, %2, %c0_1] : memref<1x2x64x8xf32, #tpu.memory_space<vmem>>, vector<1x1x32x8xf32>
    %4 = vector.shape_cast %3 : vector<1x1x32x8xf32> to vector<32x8xf32>
    %cst = arith.constant 0.000000e+00 : f32
    %5 = vector.broadcast %cst : f32 to vector<32x8xf32>
    %c0_i32 = arith.constant 0 : i32
    %c32_i32_2 = arith.constant 32 : i32
    %6 = arith.muli %c0_i32, %c32_i32_2 : i32
    %7 = tpu.assume_multiple %6, 32 : i32
    %c0_3 = arith.constant 0 : index
    %c0_4 = arith.constant 0 : index
    %8 = arith.index_cast %7 : i32 to index
    %c0_5 = arith.constant 0 : index
    %9 = vector.load %arg2[%c0_3, %c0_4, %8, %c0_5] : memref<1x2x64x8xf32, #tpu.memory_space<vmem>>, vector<1x1x32x8xf32>
    %10 = vector.shape_cast %9 : vector<1x1x32x8xf32> to vector<32x8xf32>
    %cst_6 = arith.constant dense<0.000000e+00> : vector<32x32xf32>
    %11 = tpu.matmul %4, %10, %cst_6 {dimension_numbers = #tpu.dot_dimension_numbers<[1], [1], [0], [0], [0, 0, 1, 0], [], []>} : vector<32x8xf32>, vector<32x8xf32>, vector<32x32xf32> -> vector<32x32xf32>
    %cst_7 = arith.constant 5.000000e-01 : f32
    %12 = vector.broadcast %cst_7 : f32 to vector<32x32xf32>
    %13 = arith.mulf %12, %11 : vector<32x32xf32>
    %14 = math.tanh %13 : vector<32x32xf32>
    %cst_8 = arith.constant 1.000000e+00 : f32
    %15 = vector.broadcast %cst_8 : f32 to vector<32x32xf32>
    %16 = arith.addf %14, %15 : vector<32x32xf32>
    %cst_9 = arith.constant 5.000000e-01 : f32
    %17 = vector.broadcast %cst_9 : f32 to vector<32x32xf32>
    %18 = arith.mulf %17, %16 : vector<32x32xf32>
    %cst_10 = arith.constant dense<0.000000e+00> : vector<32x8xf32>
    %19 = tpu.matmul %18, %10, %cst_10 {dimension_numbers = #tpu.dot_dimension_numbers<[1], [0], [0], [1], [0, 0, 1, 1], [], []>} : vector<32x32xf32>, vector<32x8xf32>, vector<32x8xf32> -> vector<32x8xf32>
    %20 = arith.addf %5, %19 : vector<32x8xf32>
    %c1_i32 = arith.constant 1 : i32
    %c32_i32_11 = arith.constant 32 : i32
    %21 = arith.muli %c1_i32, %c32_i32_11 : i32
    %22 = tpu.assume_multiple %21, 32 : i32
    %c0_12 = arith.constant 0 : index
    %c0_13 = arith.constant 0 : index
    %23 = arith.index_cast %22 : i32 to index
    %c0_14 = arith.constant 0 : index
    %24 = vector.load %arg2[%c0_12, %c0_13, %23, %c0_14] : memref<1x2x64x8xf32, #tpu.memory_space<vmem>>, vector<1x1x32x8xf32>
    %25 = vector.shape_cast %24 : vector<1x1x32x8xf32> to vector<32x8xf32>
    %cst_15 = arith.constant dense<0.000000e+00> : vector<32x32xf32>
    %26 = tpu.matmul %4, %25, %cst_15 {dimension_numbers = #tpu.dot_dimension_numbers<[1], [1], [0], [0], [0, 0, 1, 0], [], []>} : vector<32x8xf32>, vector<32x8xf32>, vector<32x32xf32> -> vector<32x32xf32>
    %cst_16 = arith.constant 5.000000e-01 : f32
    %27 = vector.broadcast %cst_16 : f32 to vector<32x32xf32>
    %28 = arith.mulf %27, %26 : vector<32x32xf32>
    %29 = math.tanh %28 : vector<32x32xf32>
    %cst_17 = arith.constant 1.000000e+00 : f32
    %30 = vector.broadcast %cst_17 : f32 to vector<32x32xf32>
    %31 = arith.addf %29, %30 : vector<32x32xf32>
    %cst_18 = arith.constant 5.000000e-01 : f32
    %32 = vector.broadcast %cst_18 : f32 to vector<32x32xf32>
    %33 = arith.mulf %32, %31 : vector<32x32xf32>
    %cst_19 = arith.constant dense<0.000000e+00> : vector<32x8xf32>
    %34 = tpu.matmul %33, %25, %cst_19 {dimension_numbers = #tpu.dot_dimension_numbers<[1], [0], [0], [1], [0, 0, 1, 1], [], []>} : vector<32x32xf32>, vector<32x8xf32>, vector<32x8xf32> -> vector<32x8xf32>
    %35 = arith.addf %20, %34 : vector<32x8xf32>
    %c2_i32 = arith.constant 2 : i32
    %c0_20 = arith.constant 0 : index
    %c0_21 = arith.constant 0 : index
    %c0_22 = arith.constant 0 : index
    %c0_23 = arith.constant 0 : index
    %36 = vector.load %arg3[%c0_20, %c0_21, %c0_22, %c0_23] : memref<1x2x8x8xf32, #tpu.memory_space<vmem>>, vector<1x1x8x8xf32>
    %37 = vector.shape_cast %36 : vector<1x1x8x8xf32> to vector<8x8xf32>
    %cst_24 = arith.constant dense<0.000000e+00> : vector<32x8xf32>
    %38 = tpu.matmul %4, %37, %cst_24 {dimension_numbers = #tpu.dot_dimension_numbers<[1], [0], [0], [1], [0, 0, 1, 1], [], []>} : vector<32x8xf32>, vector<8x8xf32>, vector<32x8xf32> -> vector<32x8xf32>
    %39 = arith.addf %35, %38 : vector<32x8xf32>
    %40 = arith.addf %39, %4 : vector<32x8xf32>
    %c0_25 = arith.constant 0 : index
    %c0_26 = arith.constant 0 : index
    %c0_27 = arith.constant 0 : index
    %41 = vector.load %arg4[%c0_25, %c0_26, %c0_27] : memref<1x32x16xf32, #tpu.memory_space<vmem>>, vector<1x32x8xf32>
    %42 = vector.shape_cast %41 : vector<1x32x8xf32> to vector<32x8xf32>
    %43 = vector.shape_cast %40 : vector<32x8xf32> to vector<1x32x8xf32>
    tpu.vector_store %arg4[%c0_25, %c0_26, %c0_27], %43 {strides = array<i32>} : memref<1x32x16xf32, #tpu.memory_space<vmem>>, vector<1x32x8xf32>,
    %c0_28 = arith.constant 0 : index
    %c1 = arith.constant 1 : index
    %44 = arith.index_cast %1 : i32 to index
    %c0_29 = arith.constant 0 : index
    %45 = vector.load %arg2[%c0_28, %c1, %44, %c0_29] : memref<1x2x64x8xf32, #tpu.memory_space<vmem>>, vector<1x1x32x8xf32>
    %46 = vector.shape_cast %45 : vector<1x1x32x8xf32> to vector<32x8xf32>
    %cst_30 = arith.constant 0.000000e+00 : f32
    %47 = vector.broadcast %cst_30 : f32 to vector<32x8xf32>
    %c0_i32_31 = arith.constant 0 : i32
    %c32_i32_32 = arith.constant 32 : i32
    %48 = arith.muli %c0_i32_31, %c32_i32_32 : i32
    %49 = tpu.assume_multiple %48, 32 : i32
    %c0_33 = arith.constant 0 : index
    %c1_34 = arith.constant 1 : index
    %50 = arith.index_cast %49 : i32 to index
    %c0_35 = arith.constant 0 : index
    %51 = vector.load %arg2[%c0_33, %c1_34, %50, %c0_35] : memref<1x2x64x8xf32, #tpu.memory_space<vmem>>, vector<1x1x32x8xf32>
    %52 = vector.shape_cast %51 : vector<1x1x32x8xf32> to vector<32x8xf32>
    %cst_36 = arith.constant dense<0.000000e+00> : vector<32x32xf32>
    %53 = tpu.matmul %46, %52, %cst_36 {dimension_numbers = #tpu.dot_dimension_numbers<[1], [1], [0], [0], [0, 0, 1, 0], [], []>} : vector<32x8xf32>, vector<32x8xf32>, vector<32x32xf32> -> vector<32x32xf32>
    %cst_37 = arith.constant 5.000000e-01 : f32
    %54 = vector.broadcast %cst_37 : f32 to vector<32x32xf32>
    %55 = arith.mulf %54, %53 : vector<32x32xf32>
    %56 = math.tanh %55 : vector<32x32xf32>
    %cst_38 = arith.constant 1.000000e+00 : f32
    %57 = vector.broadcast %cst_38 : f32 to vector<32x32xf32>
    %58 = arith.addf %56, %57 : vector<32x32xf32>
    %cst_39 = arith.constant 5.000000e-01 : f32
    %59 = vector.broadcast %cst_39 : f32 to vector<32x32xf32>
    %60 = arith.mulf %59, %58 : vector<32x32xf32>
    %cst_40 = arith.constant dense<0.000000e+00> : vector<32x8xf32>
    %61 = tpu.matmul %60, %52, %cst_40 {dimension_numbers = #tpu.dot_dimension_numbers<[1], [0], [0], [1], [0, 0, 1, 1], [], []>} : vector<32x32xf32>, vector<32x8xf32>, vector<32x8xf32> -> vector<32x8xf32>
    %62 = arith.addf %47, %61 : vector<32x8xf32>
    %c1_i32_41 = arith.constant 1 : i32
    %c32_i32_42 = arith.constant 32 : i32
    %63 = arith.muli %c1_i32_41, %c32_i32_42 : i32
    %64 = tpu.assume_multiple %63, 32 : i32
    %c0_43 = arith.constant 0 : index
    %c1_44 = arith.constant 1 : index
    %65 = arith.index_cast %64 : i32 to index
    %c0_45 = arith.constant 0 : index
    %66 = vector.load %arg2[%c0_43, %c1_44, %65, %c0_45] : memref<1x2x64x8xf32, #tpu.memory_space<vmem>>, vector<1x1x32x8xf32>
    %67 = vector.shape_cast %66 : vector<1x1x32x8xf32> to vector<32x8xf32>
    %cst_46 = arith.constant dense<0.000000e+00> : vector<32x32xf32>
    %68 = tpu.matmul %46, %67, %cst_46 {dimension_numbers = #tpu.dot_dimension_numbers<[1], [1], [0], [0], [0, 0, 1, 0], [], []>} : vector<32x8xf32>, vector<32x8xf32>, vector<32x32xf32> -> vector<32x32xf32>
    %cst_47 = arith.constant 5.000000e-01 : f32
    %69 = vector.broadcast %cst_47 : f32 to vector<32x32xf32>
    %70 = arith.mulf %69, %68 : vector<32x32xf32>
    %71 = math.tanh %70 : vector<32x32xf32>
    %cst_48 = arith.constant 1.000000e+00 : f32
    %72 = vector.broadcast %cst_48 : f32 to vector<32x32xf32>
    %73 = arith.addf %71, %72 : vector<32x32xf32>
    %cst_49 = arith.constant 5.000000e-01 : f32
    %74 = vector.broadcast %cst_49 : f32 to vector<32x32xf32>
    %75 = arith.mulf %74, %73 : vector<32x32xf32>
    %cst_50 = arith.constant dense<0.000000e+00> : vector<32x8xf32>
    %76 = tpu.matmul %75, %67, %cst_50 {dimension_numbers = #tpu.dot_dimension_numbers<[1], [0], [0], [1], [0, 0, 1, 1], [], []>} : vector<32x32xf32>, vector<32x8xf32>, vector<32x8xf32> -> vector<32x8xf32>
    %77 = arith.addf %62, %76 : vector<32x8xf32>
    %c2_i32_51 = arith.constant 2 : i32
    %c0_52 = arith.constant 0 : index
    %c1_53 = arith.constant 1 : index
    %c0_54 = arith.constant 0 : index
    %c0_55 = arith.constant 0 : index
    %78 = vector.load %arg3[%c0_52, %c1_53, %c0_54, %c0_55] : memref<1x2x8x8xf32, #tpu.memory_space<vmem>>, vector<1x1x8x8xf32>
    %79 = vector.shape_cast %78 : vector<1x1x8x8xf32> to vector<8x8xf32>
    %cst_56 = arith.constant dense<0.000000e+00> : vector<32x8xf32>
    %80 = tpu.matmul %46, %79, %cst_56 {dimension_numbers = #tpu.dot_dimension_numbers<[1], [0], [0], [1], [0, 0, 1, 1], [], []>} : vector<32x8xf32>, vector<8x8xf32>, vector<32x8xf32> -> vector<32x8xf32>
    %81 = arith.addf %77, %80 : vector<32x8xf32>
    %82 = arith.addf %81, %46 : vector<32x8xf32>
    %c0_57 = arith.constant 0 : index
    %c0_58 = arith.constant 0 : index
    %c8 = arith.constant 8 : index
    %83 = vector.load %arg4[%c0_57, %c0_58, %c8] : memref<1x32x16xf32, #tpu.memory_space<vmem>>, vector<1x32x8xf32>
    %84 = vector.shape_cast %83 : vector<1x32x8xf32> to vector<32x8xf32>
    %85 = vector.shape_cast %82 : vector<32x8xf32> to vector<1x32x8xf32>
    tpu.vector_store %arg4[%c0_57, %c0_58, %c8], %85 {strides = array<i32>} : memref<1x32x16xf32, #tpu.memory_space<vmem>>, vector<1x32x8xf32>,
    return
  }
  func.func @transform_0(%arg0: i32, %arg1: i32) -> (i32, i32, i32, i32) {
    %c0_i32 = arith.constant 0 : i32
    %c0_i32_0 = arith.constant 0 : i32
    %c0_i32_1 = arith.constant 0 : i32
    %c0_i32_2 = arith.constant 0 : i32
    return %arg0, %c0_i32, %c0_i32_0, %c0_i32_1 : i32, i32, i32, i32
  }
  func.func @transform_1(%arg0: i32, %arg1: i32) -> (i32, i32, i32, i32) {
    %c0_i32 = arith.constant 0 : i32
    %c0_i32_0 = arith.constant 0 : i32
    %c0_i32_1 = arith.constant 0 : i32
    %c0_i32_2 = arith.constant 0 : i32
    return %arg0, %c0_i32, %c0_i32_0, %c0_i32_1 : i32, i32, i32, i32
  }
  func.func @transform_2(%arg0: i32, %arg1: i32) -> (i32, i32, i32) {
    %c0_i32 = arith.constant 0 : i32
    %c0_i32_0 = arith.constant 0 : i32
    return %arg0, %arg1, %c0_i32 : i32, i32, i32
  }
}

</mosaic_0001>

<llo_original>
// kernel: tpu_custom_call.1
$region0: #{tpu_custom_call.1}
  #allocation0 [shape = 'u32[]', space=smem, size = 0x4, offset = 0x4, fixed_abs, tag = 'smem constant byte address 0x4 - core index']
  #allocation1 [shape = 'u32[72,128]{1,0:T(1,128)}', space=vmem, size = 0x9000, scoped, tag = 'internal scratch']
  %s0 = inlined_call_operand.vmem [shape: f32[2,2,64,8], index: 0, kind: input, shape index: {}]
  %s1 = inlined_call_operand.vmem [shape: f32[2,2,8,8], index: 1, kind: input, shape index: {}]
  %s2 = inlined_call_operand.vmem [shape: f32[2,64,16], index: 2, kind: output, shape index: {}]
  %s3 = sld [smem:[#allocation0]]
  $region41: #{tpu_custom_call.1} parent=0
    _
  %s5 = ssub.s32 1, %s3
  %s6 = scalar_select 0, %s5, %s3
  loop: start=0, step=1, limit=6
  $region2: #{tpu_custom_call.1} parent=0 // loop_pre_header
    _
  $region3: #{tpu_custom_call.1} parent=0 // loop_header
    %s8 = sphi 0, %s12
    %p9 = scmp.ge.s32.totalorder %s8, 6
    %s15 = sphi 0, %s27
    %s16 = sphi 0, %s23
    %s17 = sphi 0, %s15
    %s18 = sphi 0, %s16
    %s19 = sphi 0, %s17
    %s20 = sphi 0, %s18
    %s30 = sphi 0, %s32
    %s33 = sphi 0, %s30
    %s34 = sphi 0, %s33
    %s50 = sphi 0, %s34
    %s56 = sphi 0, %s58
    %s59 = sphi 0, %s56
    %s60 = sphi 0, %s59
    %s76 = sphi 0, %s60
    %s84 = sphi 0, %s86
    %s87 = sphi 0, %s84
    %s88 = sphi 0, %s87
    %s104 = sphi 0, %s88
  $region4: #{tpu_custom_call.1} parent=0 // loop_header_branch
    %11 = sbr.rel (%p9) target = $region8
  $region5: #{tpu_custom_call.1} parent=0 // loop_body
    %s13 = ssub.s32 %s8, 1
    %s14 = ssub.s32 %s8, 2
    %s21 = sadd.s32 1, %s16
    %p22 = scmp.ge.s32.totalorder %s21, 2
    %s23 = scalar_select %p22, 0, %s21
    %s24 = sadd.s32 1, %s15
    %s25 = scalar_select %p22, %s24, %s15
    %p26 = scmp.ge.s32.totalorder %s25, 2
    %s27 = scalar_select %p26, 0, %s25
    %s28 = ssub.s32 %s15, %s27
    %p29 = scmp.eq.s32.totalorder %s28, 0
    %s31 = sadd.s32 %s30, 1
    %s32 = scalar_select %p29, %s30, %s31
    %p35 = pneg %p29
    %p36 = scmp.eq.s32.totalorder %s8, 3
    %p37 = por %p35, %p36
    %p38 = scmp.ne.s32.totalorder %s30, %s33
    %p39 = scmp.eq.s32.totalorder %s8, 0
    %p40 = por %p38, %p39
    %p41 = scmp.ne.s32.totalorder %s30, %s33
    %p42 = scmp.eq.s32.totalorder %s13, 3
    %p43 = por %p41, %p42
    %p44 = scmp.ne.s32.totalorder %s33, %s34
    %p45 = scmp.eq.s32.totalorder %s13, 0
    %p46 = por %p44, %p45
    %p47 = scmp.ne.s32.totalorder %s33, %s34
    %p48 = scmp.eq.s32.totalorder %s14, 3
    %p49 = por %p47, %p48
    %p51 = scmp.ne.s32.totalorder %s34, %s50
    %p52 = scmp.eq.s32.totalorder %s14, 0
    %p53 = por %p51, %p52
    %s54 = ssub.s32 %s15, %s27
    %p55 = scmp.eq.s32.totalorder %s54, 0
    %s57 = sadd.s32 %s56, 1
    %s58 = scalar_select %p55, %s56, %s57
    %p61 = pneg %p55
    %p62 = scmp.eq.s32.totalorder %s8, 3
    %p63 = por %p61, %p62
    %p64 = scmp.ne.s32.totalorder %s56, %s59
    %p65 = scmp.eq.s32.totalorder %s8, 0
    %p66 = por %p64, %p65
    %p67 = scmp.ne.s32.totalorder %s56, %s59
    %p68 = scmp.eq.s32.totalorder %s13, 3
    %p69 = por %p67, %p68
    %p70 = scmp.ne.s32.totalorder %s59, %s60
    %p71 = scmp.eq.s32.totalorder %s13, 0
    %p72 = por %p70, %p71
    %p73 = scmp.ne.s32.totalorder %s59, %s60
    %p74 = scmp.eq.s32.totalorder %s14, 3
    %p75 = por %p73, %p74
    %p77 = scmp.ne.s32.totalorder %s60, %s76
    %p78 = scmp.eq.s32.totalorder %s14, 0
    %p79 = por %p77, %p78
    %s80 = ssub.s32 %s15, %s27
    %s81 = ssub.s32 %s16, %s23
    %s82 = sor.u32 %s80, %s81
    %p83 = scmp.eq.s32.totalorder %s82, 0
    %s85 = sadd.s32 %s84, 1
    %s86 = scalar_select %p83, %s84, %s85
    %p89 = pneg %p83
    %p90 = scmp.eq.s32.totalorder %s8, 3
    %p91 = por %p89, %p90
    %p92 = scmp.ne.s32.totalorder %s84, %s87
    %p93 = scmp.eq.s32.totalorder %s8, 0
    %p94 = por %p92, %p93
    %p95 = scmp.ne.s32.totalorder %s84, %s87
    %p96 = scmp.eq.s32.totalorder %s13, 3
    %p97 = por %p95, %p96
    %p98 = scmp.ne.s32.totalorder %s87, %s88
    %p99 = scmp.eq.s32.totalorder %s13, 0
    %p100 = por %p98, %p99
    %p101 = scmp.ne.s32.totalorder %s87, %s88
    %p102 = scmp.eq.s32.totalorder %s14, 3
    %p103 = por %p101, %p102
    %p105 = scmp.ne.s32.totalorder %s88, %s104
    %p106 = scmp.eq.s32.totalorder %s14, 0
    %p107 = por %p105, %p106
    %p108 = scmp.le.s32.totalorder 1, %s8
    %p109 = scmp.lt.s32.totalorder %s8, 5
    %p110 = pnand %p108, %p109
    %p111 = pneg %p110
    // Predicated region
    $region9: #{tpu_custom_call.1} parent=5 // pred_check
      _
    $region10: #{tpu_custom_call.1} parent=5 // pred_check_branch
      %113 = sbr.rel (%p110) target = $region12
    $region11: #{tpu_custom_call.1} parent=5 // pred_region
      %s114 = ssub.s32 %s8, 1
      // Predicated region
      $region13: #{tpu_custom_call.1} parent=11 // pred_check
        %p115 = pneg %p46
      $region14: #{tpu_custom_call.1} parent=11 // pred_check_branch
        %117 = sbr.rel (%p115) target = $region16
      $region15: #{tpu_custom_call.1} parent=11 // pred_region
        %p118 = scmp.lt.s32.totalorder %s17, 1
        %s119 = scalar_select %p118, %s17, 1
        %s120 = smul.addr %s119, 16
        %s121 = smul.addr %s120, 8
        %s122 = scalar_lea.vmem %s0, %s121
      $region16: #{tpu_custom_call.1} parent=11 // pred_fallthru
        _
    $region12: #{tpu_custom_call.1} parent=5 // pred_fallthru
      _
    %p123 = scmp.lt.s32.totalorder %s8, 4
    // Predicated region
    $region17: #{tpu_custom_call.1} parent=5 // pred_check
      %p124 = pneg %p123
    $region18: #{tpu_custom_call.1} parent=5 // pred_check_branch
      %126 = sbr.rel (%p124) target = $region20
    $region19: #{tpu_custom_call.1} parent=5 // pred_region
      // Predicated region
      $region21: #{tpu_custom_call.1} parent=19 // pred_check
        %p127 = pneg %p66
      $region22: #{tpu_custom_call.1} parent=19 // pred_check_branch
        %129 = sbr.rel (%p127) target = $region24
      $region23: #{tpu_custom_call.1} parent=19 // pred_region
        %p130 = scmp.lt.s32.totalorder %s15, 1
        %s131 = scalar_select %p130, %s15, 1
        %s132 = smul.addr %s131, 2
        %s133 = smul.addr %s132, 8
        %s134 = scalar_lea.vmem %s1, %s133
      $region24: #{tpu_custom_call.1} parent=19 // pred_fallthru
        _
    $region20: #{tpu_custom_call.1} parent=5 // pred_fallthru
      _
    %p135 = scmp.le.s32.totalorder 1, %s8
    %p136 = scmp.lt.s32.totalorder %s8, 5
    %p137 = pnand %p135, %p136
    %p138 = pneg %p137
    // Predicated region
    $region25: #{tpu_custom_call.1} parent=5 // pred_check
      _
    $region26: #{tpu_custom_call.1} parent=5 // pred_check_branch
      %140 = sbr.rel (%p137) target = $region28
    $region27: #{tpu_custom_call.1} parent=5 // pred_region
      %s141 = ssub.s32 %s8, 1
      %p142 = scmp.lt.s32.totalorder %s17, 1
      %s143 = scalar_select %p142, %s17, 1
      %s144 = smul.addr %s143, 16
      %s145 = smul.addr %s144, 8
      %s146 = scalar_lea.vmem %s0, %s145
      %p147 = pneg %p46
      %p148 = pneg %p43
      %p149 = scmp.lt.s32.totalorder %s17, 1
      %s150 = scalar_select %p149, %s17, 1
      %s151 = smul.addr %s150, 2
      %s152 = smul.addr %s151, 8
      %s153 = scalar_lea.vmem %s1, %s152
      %p154 = pneg %p72
      %p155 = pneg %p69
      %p156 = pneg %p100
      %p157 = pneg %p97
      %s158 = smul.u32 4, %s18
      %p159 = scmp.lt.s32.totalorder %s17, 1
      %s160 = scalar_select %p159, %s17, 1
      %p161 = scmp.lt.s32.totalorder %s158, 7
      %s162 = scalar_select %p161, %s158, 7
      %s163 = smul.addr %s160, 8
      %s164 = sadd.s32 %s162, %s163
      %s165 = smul.addr %s164, 8
      %s166 = scalar_lea.vmem %s2, %s165
      %p167 = scmp.lt.s32.totalorder %s17, 1
      %s168 = scalar_select %p167, %s17, 1
      %s169 = smul.addr %s168, 16
      %s170 = smul.addr %s169, 8
      %s171 = scalar_lea.vmem %s0, %s170
      %p172 = scmp.lt.s32.totalorder %s17, 1
      %s173 = scalar_select %p172, %s17, 1
      %s174 = smul.addr %s173, 2
      %s175 = smul.addr %s174, 8
      %s176 = scalar_lea.vmem %s1, %s175
      %s177 = smul.u32 4, %s18
      %p178 = scmp.lt.s32.totalorder %s17, 1
      %s179 = scalar_select %p178, %s17, 1
      %p180 = scmp.lt.s32.totalorder %s177, 7
      %s181 = scalar_select %p180, %s177, 7
      %s182 = smul.addr %s179, 8
      %s183 = sadd.s32 %s181, %s182
      %s184 = smul.addr %s183, 8
      %s185 = scalar_lea.vmem %s2, %s184
      %s186 = smul.u32 4, %s18
      %s187 = smul.u32 %s18, 32
      %s188 = scalar_lea.vmem %s171, %s187
      %v189 = vld [vmem:[%s188] sm:$0xff]
      %v190 = vld [vmem:[%s188 + $0x8] sm:$0xff]
      %v191 = vld [vmem:[%s188 + $0x10] sm:$0xff]
      %v192 = vld [vmem:[%s188 + $0x18] sm:$0xff]
      %v193 = vld [vmem:[%s171] sm:$0xff]
      %v194 = vld [vmem:[%s171 + $0x8] sm:$0xff]
      %v195 = vld [vmem:[%s171 + $0x10] sm:$0xff]
      %v196 = vld [vmem:[%s171 + $0x18] sm:$0xff]
      %vm197 = vcmask 64512
      %v199 = vsel %vm197, %v189, 0
      %v202 = vsel %vm197, %v190, 0
      %v205 = vsel %vm197, %v191, 0
      %v208 = vsel %vm197, %v192, 0
      %v211 = vsel %vm197, %v193, 0
      %v214 = vsel %vm197, %v194, 0
      %v217 = vsel %vm197, %v195, 0
      %v220 = vsel %vm197, %v196, 0
      %222 = vmatpush.xpose.msra.mxu0 0.0
      %223 = vmatpush.xpose.msra.mxu0 0.0
      %224 = vmatpush.xpose.msra.mxu0 0.0
      %225 = vmatpush.xpose.msra.mxu0 0.0
      %226 = vmatpush.xpose.msra.mxu0 0.0
      %227 = vmatpush.xpose.msra.mxu0 0.0
      %228 = vmatpush.xpose.msra.mxu0 0.0
      %229 = vmatpush.xpose.msra.mxu0 0.0
      %230 = vmatpush.xpose.msra.mxu0 0.0
      %231 = vmatpush.xpose.msra.mxu0 0.0
      %232 = vmatpush.xpose.msra.mxu0 0.0
      %233 = vmatpush.xpose.msra.mxu0 0.0
      %234 = vmatpush.xpose.msra.mxu0 %v220
      %235 = vmatpush.xpose.msra.mxu0 %v217
      %236 = vmatpush.xpose.msra.mxu0 %v214
      %237 = vmatpush.xpose.msra.mxu0 %v211
      %238 = vmatmul.f32.gmra.mxu0 %v199
      %v239 = vpop.f32.mrf.mxu0
      %v240 = vadd.f32 0.0, %v239
      %241 = vmatmul.f32.gmra.mxu0 %v202
      %v242 = vpop.f32.mrf.mxu0
      %v243 = vadd.f32 0.0, %v242
      %244 = vmatmul.f32.gmra.mxu0 %v205
      %v245 = vpop.f32.mrf.mxu0
      %v246 = vadd.f32 0.0, %v245
      %247 = vmatmul.f32.gmra.mxu0 %v208
      %v248 = vpop.f32.mrf.mxu0
      %v249 = vadd.f32 0.0, %v248
      %250 = vdwg.mxu0
      %v251 = vmul.f32 %v240, 0.5
      %v252 = vmul.f32 %v243, 0.5
      %v253 = vmul.f32 %v246, 0.5
      %v254 = vmul.f32 %v249, 0.5
      %v255 = vtanh.pop %v251
      %v256 = vtanh.pop %v252
      %v257 = vtanh.pop %v253
      %v258 = vtanh.pop %v254
      %v259 = vadd.f32 %v255, 1.0
      %v260 = vadd.f32 %v256, 1.0
      %v261 = vadd.f32 %v257, 1.0
      %v262 = vadd.f32 %v258, 1.0
      %v263 = vmul.f32 %v259, 0.5
      %v264 = vmul.f32 %v260, 0.5
      %v265 = vmul.f32 %v261, 0.5
      %v266 = vmul.f32 %v262, 0.5
      %s267 = scalar_lea.vmem %s171, 32
      %v268 = vld [vmem:[%s267] sm:$0xff]
      %v269 = vld [vmem:[%s267 + $0x8] sm:$0xff]
      %v270 = vld [vmem:[%s267 + $0x10] sm:$0xff]
      %v271 = vld [vmem:[%s267 + $0x18] sm:$0xff]
      %v273 = vsel %vm197, %v268, 0
      %v276 = vsel %vm197, %v269, 0
      %v279 = vsel %vm197, %v270, 0
      %v282 = vsel %vm197, %v271, 0
      %284 = vmatpush.xpose.msra.mxu0 0.0
      %285 = vmatpush.xpose.msra.mxu0 0.0
      %286 = vmatpush.xpose.msra.mxu0 0.0
      %287 = vmatpush.xpose.msra.mxu0 0.0
      %288 = vmatpush.xpose.msra.mxu0 0.0
      %289 = vmatpush.xpose.msra.mxu0 0.0
      %290 = vmatpush.xpose.msra.mxu0 0.0
      %291 = vmatpush.xpose.msra.mxu0 0.0
      %292 = vmatpush.xpose.msra.mxu0 0.0
      %293 = vmatpush.xpose.msra.mxu0 0.0
      %294 = vmatpush.xpose.msra.mxu0 0.0
      %295 = vmatpush.xpose.msra.mxu0 0.0
      %296 = vmatpush.xpose.msra.mxu0 %v282
      %297 = vmatpush.xpose.msra.mxu0 %v279
      %298 = vmatpush.xpose.msra.mxu0 %v276
      %299 = vmatpush.xpose.msra.mxu0 %v273
      %300 = vmatmul.f32.gmra.mxu0 %v199
      %v301 = vpop.f32.mrf.mxu0
      %v302 = vadd.f32 0.0, %v301
      %303 = vmatmul.f32.gmra.mxu0 %v202
      %v304 = vpop.f32.mrf.mxu0
      %v305 = vadd.f32 0.0, %v304
      %306 = vmatmul.f32.gmra.mxu0 %v205
      %v307 = vpop.f32.mrf.mxu0
      %v308 = vadd.f32 0.0, %v307
      %309 = vmatmul.f32.gmra.mxu0 %v208
      %v310 = vpop.f32.mrf.mxu0
      %v311 = vadd.f32 0.0, %v310
      %312 = vdwg.mxu0
      %v313 = vmul.f32 %v302, 0.5
      %v314 = vmul.f32 %v305, 0.5
      %v315 = vmul.f32 %v308, 0.5
      %v316 = vmul.f32 %v311, 0.5
      %v317 = vtanh.pop %v313
      %v318 = vtanh.pop %v314
      %v319 = vtanh.pop %v315
      %v320 = vtanh.pop %v316
      %v321 = vadd.f32 %v317, 1.0
      %v322 = vadd.f32 %v318, 1.0
      %v323 = vadd.f32 %v319, 1.0
      %v324 = vadd.f32 %v320, 1.0
      %v325 = vmul.f32 %v321, 0.5
      %v326 = vmul.f32 %v322, 0.5
      %v327 = vmul.f32 %v323, 0.5
      %v328 = vmul.f32 %v324, 0.5
      %vm329 = vcmask 261120
      %v331 = vsel %vm329, %v325, 0
      %v334 = vsel %vm329, %v326, 0
      %v337 = vsel %vm329, %v327, 0
      %v340 = vsel %vm329, %v328, 0
      %342 = vmatpush.msra.mxu0 0.0
      %343 = vmatpush.msra.mxu0 0.0
      %344 = vmatpush.msra.mxu0 0.0
      %345 = vmatpush.msra.mxu0 0.0
      %346 = vmatpush.msra.mxu0 0.0
      %347 = vmatpush.msra.mxu0 0.0
      %348 = vmatpush.msra.mxu0 0.0
      %349 = vmatpush.msra.mxu0 0.0
      %350 = vmatpush.msra.mxu0 0.0
      %351 = vmatpush.msra.mxu0 0.0
      %352 = vmatpush.msra.mxu0 0.0
      %353 = vmatpush.msra.mxu0 0.0
      %354 = vmatpush.msra.mxu0 %v271
      %355 = vmatpush.msra.mxu0 %v270
      %356 = vmatpush.msra.mxu0 %v269
      %357 = vmatpush.msra.mxu0 %v268
      %358 = vmatmul.f32.gmra.mxu0 %v331
      %v359 = vpop.f32.mrf.mxu0
      %v360 = vadd.f32 0.0, %v359
      %361 = vmatmul.f32.gmra.mxu0 %v334
      %v362 = vpop.f32.mrf.mxu0
      %v363 = vadd.f32 0.0, %v362
      %364 = vmatmul.f32.gmra.mxu0 %v337
      %v365 = vpop.f32.mrf.mxu0
      %v366 = vadd.f32 0.0, %v365
      %367 = vmatmul.f32.gmra.mxu0 %v340
      %v368 = vpop.f32.mrf.mxu0
      %v369 = vadd.f32 0.0, %v368
      %370 = vdwg.mxu0
      %v372 = vsel %vm329, %v263, 0
      %v375 = vsel %vm329, %v264, 0
      %v378 = vsel %vm329, %v265, 0
      %v381 = vsel %vm329, %v266, 0
      %383 = vmatpush.msra.mxu0 0.0
      %384 = vmatpush.msra.mxu0 0.0
      %385 = vmatpush.msra.mxu0 0.0
      %386 = vmatpush.msra.mxu0 0.0
      %387 = vmatpush.msra.mxu0 0.0
      %388 = vmatpush.msra.mxu0 0.0
      %389 = vmatpush.msra.mxu0 0.0
      %390 = vmatpush.msra.mxu0 0.0
      %391 = vmatpush.msra.mxu0 0.0
      %392 = vmatpush.msra.mxu0 0.0
      %393 = vmatpush.msra.mxu0 0.0
      %394 = vmatpush.msra.mxu0 0.0
      %395 = vmatpush.msra.mxu0 %v196
      %396 = vmatpush.msra.mxu0 %v195
      %397 = vmatpush.msra.mxu0 %v194
      %398 = vmatpush.msra.mxu0 %v193
      %399 = vmatmul.f32.gmra.mxu0 %v372
      %v400 = vpop.f32.mrf.mxu0
      %v401 = vadd.f32 %v360, %v400
      %402 = vmatmul.f32.gmra.mxu0 %v375
      %v403 = vpop.f32.mrf.mxu0
      %v404 = vadd.f32 %v363, %v403
      %405 = vmatmul.f32.gmra.mxu0 %v378
      %v406 = vpop.f32.mrf.mxu0
      %v407 = vadd.f32 %v366, %v406
      %408 = vmatmul.f32.gmra.mxu0 %v381
      %v409 = vpop.f32.mrf.mxu0
      %v410 = vadd.f32 %v369, %v409
      %411 = vdwg.mxu0
      %v412 = vld [vmem:[%s176] sm:$0xff]
      %413 = vmatpush.msra.mxu0 0.0
      %414 = vmatpush.msra.mxu0 0.0
      %415 = vmatpush.msra.mxu0 0.0
      %416 = vmatpush.msra.mxu0 0.0
      %417 = vmatpush.msra.mxu0 0.0
      %418 = vmatpush.msra.mxu0 0.0
      %419 = vmatpush.msra.mxu0 0.0
      %420 = vmatpush.msra.mxu0 0.0
      %421 = vmatpush.msra.mxu0 0.0
      %422 = vmatpush.msra.mxu0 0.0
      %423 = vmatpush.msra.mxu0 0.0
      %424 = vmatpush.msra.mxu0 0.0
      %425 = vmatpush.msra.mxu0 0.0
      %426 = vmatpush.msra.mxu0 0.0
      %427 = vmatpush.msra.mxu0 0.0
      %428 = vmatpush.msra.mxu0 %v412
      %429 = vmatmul.f32.gmra.mxu0 %v199
      %v430 = vpop.f32.mrf.mxu0
      %v431 = vadd.f32 0.0, %v430
      %432 = vmatmul.f32.gmra.mxu0 %v202
      %v433 = vpop.f32.mrf.mxu0
      %v434 = vadd.f32 0.0, %v433
      %435 = vmatmul.f32.gmra.mxu0 %v205
      %v436 = vpop.f32.mrf.mxu0
      %v437 = vadd.f32 0.0, %v436
      %438 = vmatmul.f32.gmra.mxu0 %v208
      %v439 = vpop.f32.mrf.mxu0
      %v440 = vadd.f32 0.0, %v439
      %441 = vdwg.mxu0
      %v442 = vadd.f32 %v401, %v431
      %v443 = vadd.f32 %v404, %v434
      %v444 = vadd.f32 %v407, %v437
      %v445 = vadd.f32 %v410, %v440
      %v446 = vadd.f32 %v442, %v189
      %v447 = vadd.f32 %v443, %v190
      %v448 = vadd.f32 %v444, %v191
      %v449 = vadd.f32 %v445, %v192
      %450 = vst.msk [vmem:[%s185] sm:$0xff] %vm197, %v446
      %451 = vst.msk [vmem:[%s185 + $0x8] sm:$0xff] %vm197, %v447
      %452 = vst.msk [vmem:[%s185 + $0x10] sm:$0xff] %vm197, %v448
      %453 = vst.msk [vmem:[%s185 + $0x18] sm:$0xff] %vm197, %v449
      %s454 = sadd.s32 %s187, 64
      %s455 = scalar_lea.vmem %s171, %s454
      %v456 = vld [vmem:[%s455] sm:$0xff]
      %v457 = vld [vmem:[%s455 + $0x8] sm:$0xff]
      %v458 = vld [vmem:[%s455 + $0x10] sm:$0xff]
      %v459 = vld [vmem:[%s455 + $0x18] sm:$0xff]
      %s460 = sadd.s32 0, 64
      %s461 = scalar_lea.vmem %s171, %s460
      %v462 = vld [vmem:[%s461] sm:$0xff]
      %v463 = vld [vmem:[%s461 + $0x8] sm:$0xff]
      %v464 = vld [vmem:[%s461 + $0x10] sm:$0xff]
      %v465 = vld [vmem:[%s461 + $0x18] sm:$0xff]
      %v467 = vsel %vm197, %v456, 0
      %v470 = vsel %vm197, %v457, 0
      %v473 = vsel %vm197, %v458, 0
      %v476 = vsel %vm197, %v459, 0
      %v479 = vsel %vm197, %v462, 0
      %v482 = vsel %vm197, %v463, 0
      %v485 = vsel %vm197, %v464, 0
      %v488 = vsel %vm197, %v465, 0
      %490 = vmatpush.xpose.msra.mxu0 0.0
      %491 = vmatpush.xpose.msra.mxu0 0.0
      %492 = vmatpush.xpose.msra.mxu0 0.0
      %493 = vmatpush.xpose.msra.mxu0 0.0
      %494 = vmatpush.xpose.msra.mxu0 0.0
      %495 = vmatpush.xpose.msra.mxu0 0.0
      %496 = vmatpush.xpose.msra.mxu0 0.0
      %497 = vmatpush.xpose.msra.mxu0 0.0
      %498 = vmatpush.xpose.msra.mxu0 0.0
      %499 = vmatpush.xpose.msra.mxu0 0.0
      %500 = vmatpush.xpose.msra.mxu0 0.0
      %501 = vmatpush.xpose.msra.mxu0 0.0
      %502 = vmatpush.xpose.msra.mxu0 %v488
      %503 = vmatpush.xpose.msra.mxu0 %v485
      %504 = vmatpush.xpose.msra.mxu0 %v482
      %505 = vmatpush.xpose.msra.mxu0 %v479
      %506 = vmatmul.f32.gmra.mxu0 %v467
      %v507 = vpop.f32.mrf.mxu0
      %v508 = vadd.f32 0.0, %v507
      %509 = vmatmul.f32.gmra.mxu0 %v470
      %v510 = vpop.f32.mrf.mxu0
      %v511 = vadd.f32 0.0, %v510
      %512 = vmatmul.f32.gmra.mxu0 %v473
      %v513 = vpop.f32.mrf.mxu0
      %v514 = vadd.f32 0.0, %v513
      %515 = vmatmul.f32.gmra.mxu0 %v476
      %v516 = vpop.f32.mrf.mxu0
      %v517 = vadd.f32 0.0, %v516
      %518 = vdwg.mxu0
      %v519 = vmul.f32 %v508, 0.5
      %v520 = vmul.f32 %v511, 0.5
      %v521 = vmul.f32 %v514, 0.5
      %v522 = vmul.f32 %v517, 0.5
      %v523 = vtanh.pop %v519
      %v524 = vtanh.pop %v520
      %v525 = vtanh.pop %v521
      %v526 = vtanh.pop %v522
      %v527 = vadd.f32 %v523, 1.0
      %v528 = vadd.f32 %v524, 1.0
      %v529 = vadd.f32 %v525, 1.0
      %v530 = vadd.f32 %v526, 1.0
      %v531 = vmul.f32 %v527, 0.5
      %v532 = vmul.f32 %v528, 0.5
      %v533 = vmul.f32 %v529, 0.5
      %v534 = vmul.f32 %v530, 0.5
      %s535 = sadd.s32 32, 64
      %s536 = scalar_lea.vmem %s171, %s535
      %v537 = vld [vmem:[%s536] sm:$0xff]
      %v538 = vld [vmem:[%s536 + $0x8] sm:$0xff]
      %v539 = vld [vmem:[%s536 + $0x10] sm:$0xff]
      %v540 = vld [vmem:[%s536 + $0x18] sm:$0xff]
      %v542 = vsel %vm197, %v537, 0
      %v545 = vsel %vm197, %v538, 0
      %v548 = vsel %vm197, %v539, 0
      %v551 = vsel %vm197, %v540, 0
      %553 = vmatpush.xpose.msra.mxu0 0.0
      %554 = vmatpush.xpose.msra.mxu0 0.0
      %555 = vmatpush.xpose.msra.mxu0 0.0
      %556 = vmatpush.xpose.msra.mxu0 0.0
      %557 = vmatpush.xpose.msra.mxu0 0.0
      %558 = vmatpush.xpose.msra.mxu0 0.0
      %559 = vmatpush.xpose.msra.mxu0 0.0
      %560 = vmatpush.xpose.msra.mxu0 0.0
      %561 = vmatpush.xpose.msra.mxu0 0.0
      %562 = vmatpush.xpose.msra.mxu0 0.0
      %563 = vmatpush.xpose.msra.mxu0 0.0
      %564 = vmatpush.xpose.msra.mxu0 0.0
      %565 = vmatpush.xpose.msra.mxu0 %v551
      %566 = vmatpush.xpose.msra.mxu0 %v548
      %567 = vmatpush.xpose.msra.mxu0 %v545
      %568 = vmatpush.xpose.msra.mxu0 %v542
      %569 = vmatmul.f32.gmra.mxu0 %v467
      %v570 = vpop.f32.mrf.mxu0
      %v571 = vadd.f32 0.0, %v570
      %572 = vmatmul.f32.gmra.mxu0 %v470
      %v573 = vpop.f32.mrf.mxu0
      %v574 = vadd.f32 0.0, %v573
      %575 = vmatmul.f32.gmra.mxu0 %v473
      %v576 = vpop.f32.mrf.mxu0
      %v577 = vadd.f32 0.0, %v576
      %578 = vmatmul.f32.gmra.mxu0 %v476
      %v579 = vpop.f32.mrf.mxu0
      %v580 = vadd.f32 0.0, %v579
      %581 = vdwg.mxu0
      %v582 = vmul.f32 %v571, 0.5
      %v583 = vmul.f32 %v574, 0.5
      %v584 = vmul.f32 %v577, 0.5
      %v585 = vmul.f32 %v580, 0.5
      %v586 = vtanh.pop %v582
      %v587 = vtanh.pop %v583
      %v588 = vtanh.pop %v584
      %v589 = vtanh.pop %v585
      %v590 = vadd.f32 %v586, 1.0
      %v591 = vadd.f32 %v587, 1.0
      %v592 = vadd.f32 %v588, 1.0
      %v593 = vadd.f32 %v589, 1.0
      %v594 = vmul.f32 %v590, 0.5
      %v595 = vmul.f32 %v591, 0.5
      %v596 = vmul.f32 %v592, 0.5
      %v597 = vmul.f32 %v593, 0.5
      %v599 = vsel %vm329, %v594, 0
      %v602 = vsel %vm329, %v595, 0
      %v605 = vsel %vm329, %v596, 0
      %v608 = vsel %vm329, %v597, 0
      %610 = vmatpush.msra.mxu0 0.0
      %611 = vmatpush.msra.mxu0 0.0
      %612 = vmatpush.msra.mxu0 0.0
      %613 = vmatpush.msra.mxu0 0.0
      %614 = vmatpush.msra.mxu0 0.0
      %615 = vmatpush.msra.mxu0 0.0
      %616 = vmatpush.msra.mxu0 0.0
      %617 = vmatpush.msra.mxu0 0.0
      %618 = vmatpush.msra.mxu0 0.0
      %619 = vmatpush.msra.mxu0 0.0
      %620 = vmatpush.msra.mxu0 0.0
      %621 = vmatpush.msra.mxu0 0.0
      %622 = vmatpush.msra.mxu0 %v540
      %623 = vmatpush.msra.mxu0 %v539
      %624 = vmatpush.msra.mxu0 %v538
      %625 = vmatpush.msra.mxu0 %v537
      %626 = vmatmul.f32.gmra.mxu0 %v599
      %v627 = vpop.f32.mrf.mxu0
      %v628 = vadd.f32 0.0, %v627
      %629 = vmatmul.f32.gmra.mxu0 %v602
      %v630 = vpop.f32.mrf.mxu0
      %v631 = vadd.f32 0.0, %v630
      %632 = vmatmul.f32.gmra.mxu0 %v605
      %v633 = vpop.f32.mrf.mxu0
      %v634 = vadd.f32 0.0, %v633
      %635 = vmatmul.f32.gmra.mxu0 %v608
      %v636 = vpop.f32.mrf.mxu0
      %v637 = vadd.f32 0.0, %v636
      %638 = vdwg.mxu0
      %v640 = vsel %vm329, %v531, 0
      %v643 = vsel %vm329, %v532, 0
      %v646 = vsel %vm329, %v533, 0
      %v649 = vsel %vm329, %v534, 0
      %651 = vmatpush.msra.mxu0 0.0
      %652 = vmatpush.msra.mxu0 0.0
      %653 = vmatpush.msra.mxu0 0.0
      %654 = vmatpush.msra.mxu0 0.0
      %655 = vmatpush.msra.mxu0 0.0
      %656 = vmatpush.msra.mxu0 0.0
      %657 = vmatpush.msra.mxu0 0.0
      %658 = vmatpush.msra.mxu0 0.0
      %659 = vmatpush.msra.mxu0 0.0
      %660 = vmatpush.msra.mxu0 0.0
      %661 = vmatpush.msra.mxu0 0.0
      %662 = vmatpush.msra.mxu0 0.0
      %663 = vmatpush.msra.mxu0 %v465
      %664 = vmatpush.msra.mxu0 %v464
      %665 = vmatpush.msra.mxu0 %v463
      %666 = vmatpush.msra.mxu0 %v462
      %667 = vmatmul.f32.gmra.mxu0 %v640
      %v668 = vpop.f32.mrf.mxu0
      %v669 = vadd.f32 %v628, %v668
      %670 = vmatmul.f32.gmra.mxu0 %v643
      %v671 = vpop.f32.mrf.mxu0
      %v672 = vadd.f32 %v631, %v671
      %673 = vmatmul.f32.gmra.mxu0 %v646
      %v674 = vpop.f32.mrf.mxu0
      %v675 = vadd.f32 %v634, %v674
      %676 = vmatmul.f32.gmra.mxu0 %v649
      %v677 = vpop.f32.mrf.mxu0
      %v678 = vadd.f32 %v637, %v677
      %679 = vdwg.mxu0
      %s680 = scalar_lea.vmem %s176, 8
      %v681 = vld [vmem:[%s680] sm:$0xff]
      %682 = vmatpush.msra.mxu0 0.0
      %683 = vmatpush.msra.mxu0 0.0
      %684 = vmatpush.msra.mxu0 0.0
      %685 = vmatpush.msra.mxu0 0.0
      %686 = vmatpush.msra.mxu0 0.0
      %687 = vmatpush.msra.mxu0 0.0
      %688 = vmatpush.msra.mxu0 0.0
      %689 = vmatpush.msra.mxu0 0.0
      %690 = vmatpush.msra.mxu0 0.0
      %691 = vmatpush.msra.mxu0 0.0
      %692 = vmatpush.msra.mxu0 0.0
      %693 = vmatpush.msra.mxu0 0.0
      %694 = vmatpush.msra.mxu0 0.0
      %695 = vmatpush.msra.mxu0 0.0
      %696 = vmatpush.msra.mxu0 0.0
      %697 = vmatpush.msra.mxu0 %v681
      %698 = vmatmul.f32.gmra.mxu0 %v467
      %v699 = vpop.f32.mrf.mxu0
      %v700 = vadd.f32 0.0, %v699
      %701 = vmatmul.f32.gmra.mxu0 %v470
      %v702 = vpop.f32.mrf.mxu0
      %v703 = vadd.f32 0.0, %v702
      %704 = vmatmul.f32.gmra.mxu0 %v473
      %v705 = vpop.f32.mrf.mxu0
      %v706 = vadd.f32 0.0, %v705
      %707 = vmatmul.f32.gmra.mxu0 %v476
      %v708 = vpop.f32.mrf.mxu0
      %v709 = vadd.f32 0.0, %v708
      %710 = vdwg.mxu0
      %v711 = vadd.f32 %v669, %v700
      %v712 = vadd.f32 %v672, %v703
      %v713 = vadd.f32 %v675, %v706
      %v714 = vadd.f32 %v678, %v709
      %v715 = vadd.f32 %v711, %v456
      %v716 = vadd.f32 %v712, %v457
      %v717 = vadd.f32 %v713, %v458
      %v718 = vadd.f32 %v714, %v459
      %723 = vrot.lane.b32.xlu0 %v715, 8
      %v724 = vpop.permute.xlu0 %723
      %725 = vrot.lane.b32.xlu0 %v716, 8
      %v726 = vpop.permute.xlu0 %725
      %727 = vrot.lane.b32.xlu0 %v717, 8
      %v728 = vpop.permute.xlu0 %727
      %729 = vrot.lane.b32.xlu0 %v718, 8
      %v730 = vpop.permute.xlu0 %729
      %vm735 = vcmask 130112
      %736 = vst.msk [vmem:[%s185] sm:$0xff] %vm735, %v724
      %737 = vst.msk [vmem:[%s185 + $0x8] sm:$0xff] %vm735, %v726
      %738 = vst.msk [vmem:[%s185 + $0x10] sm:$0xff] %vm735, %v728
      %739 = vst.msk [vmem:[%s185 + $0x18] sm:$0xff] %vm735, %v730
      %s740 = smul.u32 4, %s18
      %p741 = scmp.lt.s32.totalorder %s17, 1
      %s742 = scalar_select %p741, %s17, 1
      %p743 = scmp.lt.s32.totalorder %s740, 7
      %s744 = scalar_select %p743, %s740, 7
      %s745 = smul.addr %s742, 8
      %s746 = sadd.s32 %s744, %s745
      %s747 = smul.addr %s746, 8
      %s748 = scalar_lea.vmem %s2, %s747
      // Predicated region
      $region29: #{tpu_custom_call.1} parent=27 // pred_check
        %p749 = pneg %p97
      $region30: #{tpu_custom_call.1} parent=27 // pred_check_branch
        %751 = sbr.rel (%p749) target = $region32
      $region31: #{tpu_custom_call.1} parent=27 // pred_region
        %s752 = smul.u32 4, %s18
      $region32: #{tpu_custom_call.1} parent=27 // pred_fallthru
        _
    $region28: #{tpu_custom_call.1} parent=5 // pred_fallthru
      _
    %p753 = scmp.le.s32.totalorder 2, %s8
    // Predicated region
    $region33: #{tpu_custom_call.1} parent=5 // pred_check
      %p754 = pneg %p753
    $region34: #{tpu_custom_call.1} parent=5 // pred_check_branch
      %756 = sbr.rel (%p754) target = $region36
    $region35: #{tpu_custom_call.1} parent=5 // pred_region
      %s757 = ssub.s32 %s8, 2
      // Predicated region
      $region37: #{tpu_custom_call.1} parent=35 // pred_check
        %p758 = pneg %p103
      $region38: #{tpu_custom_call.1} parent=35 // pred_check_branch
        %760 = sbr.rel (%p758) target = $region40
      $region39: #{tpu_custom_call.1} parent=35 // pred_region
        %s761 = smul.u32 4, %s20
        %p762 = scmp.lt.s32.totalorder %s19, 1
        %s763 = scalar_select %p762, %s19, 1
        %p764 = scmp.lt.s32.totalorder %s761, 7
        %s765 = scalar_select %p764, %s761, 7
        %s766 = smul.addr %s763, 8
        %s767 = sadd.s32 %s765, %s766
        %s768 = smul.addr %s767, 8
        %s769 = scalar_lea.vmem %s2, %s768
      $region40: #{tpu_custom_call.1} parent=35 // pred_fallthru
        _
    $region36: #{tpu_custom_call.1} parent=5 // pred_fallthru
      _
  $region6: #{tpu_custom_call.1} parent=0 // loop_footer
    %s12 = sadd.s32 1, %s8
  $region7: #{tpu_custom_call.1} parent=0 // loop_footer_branch
    %7 = sbr.rel target = $region3
  $region8: #{tpu_custom_call.1} parent=0 // loop_exit
    _

</llo_original>
